<compile_context>
chip_gen: v7x
topology: tpu7x:2x2x1
jax: 0.10.0
libtpu: 0.0.40
codegen_flags: <defaults>
</compile_context>

<pallas_src>
import jax
import jax.numpy as jnp
from jax.experimental import pallas as pl
from jax.experimental.pallas import tpu as pltpu

_ROWS = 8          # sublane dimension of the 2-D layout
_LANES = 128       # lane granularity


def _softmax_fused_kernel(x_ref, o_ref):
    """Single-block fused softmax: one read of x, one write of o."""
    x = x_ref[...].astype(jnp.float32)                     # (8, C)
    # Sublane reduce first (VPU), then a single lane reduce (XLU).
    m = jnp.max(x, axis=0, keepdims=True)                  # (1, C)
    m = jnp.max(m, axis=1, keepdims=True)                  # (1, 1)
    e = jnp.exp(x - m)                                     # -inf padding -> exactly 0
    s = jnp.sum(e, axis=0, keepdims=True)                  # (1, C)
    s = jnp.sum(s, axis=1, keepdims=True)                  # (1, 1)
    o_ref[...] = e * pl.reciprocal(s, approx=False)


def _softmax_stats_kernel(x_ref, m_ref, l_ref):
    """Streaming pass 1: flash-style running max / rescaled exp-sum.

    m_ref, l_ref are (1, 1) f32 outputs whose block index is constant across
    the grid, so they double as resident accumulators (init at step 0).
    """
    j = pl.program_id(0)

    @pl.when(j == 0)
    def _():
        m_ref[...] = jnp.full(m_ref.shape, -jnp.inf, dtype=jnp.float32)
        l_ref[...] = jnp.zeros(l_ref.shape, dtype=jnp.float32)

    x = x_ref[...].astype(jnp.float32)                     # (8, TILE_C)

    col_max = jnp.max(x, axis=0, keepdims=True)            # (1, TILE_C)
    m_blk = jnp.max(col_max, axis=1, keepdims=True)        # (1, 1)

    m_old = m_ref[...]
    m_new = jnp.maximum(m_old, m_blk)

    e = jnp.exp(x - m_new)                                 # -inf padding -> 0
    col_sum = jnp.sum(e, axis=0, keepdims=True)            # (1, TILE_C)
    s_blk = jnp.sum(col_sum, axis=1, keepdims=True)        # (1, 1)

    # Rescale the running sum to the new max, then add this chunk.
    l_ref[...] = l_ref[...] * jnp.exp(m_old - m_new) + s_blk
    m_ref[...] = m_new


def _softmax_norm_kernel(m_ref, l_ref, x_ref, o_ref):
    """Streaming pass 2: o = exp(x - m) / l, written lane-dense."""
    x = x_ref[...].astype(jnp.float32)                     # (8, TILE_C)
    inv_l = pl.reciprocal(l_ref[...], approx=False)        # (1, 1)
    o_ref[...] = jnp.exp(x - m_ref[...]) * inv_l           # padded lanes -> 0


def softmax_stable(data: jax.Array, *, max_tile_cols: int = 8192,
                   fused_max_cols: int = 32768) -> jax.Array:
    """Numerically-stable softmax over a 1-D vector, computed in Pallas kernels.

    fused_max_cols=32768 -> single-kernel fast path up to N = 8*32768 = 262144
    elements (~3 MiB of VMEM working set).  Beyond that, a two-pass streaming
    schedule with (8, max_tile_cols) blocks (256 KiB per f32 buffer) is used.
    """
    assert data.ndim == 1, "softmax_stable expects a 1-D input (matches the PyTorch module)"
    n = data.shape[0]
    assert n >= 1

    # Keep floating inputs in their native dtype (bf16 halves HBM read bytes);
    # integers are promoted to f32 so -inf padding is representable.
    if not jnp.issubdtype(data.dtype, jnp.floating):
        data = data.astype(jnp.float32)

    cols_needed = -(-n // _ROWS)
    cols128 = ((cols_needed + _LANES - 1) // _LANES) * _LANES

    if cols128 <= fused_max_cols:
        # ---- fused single-block fast path: one read of x, one write of o ----
        cols = cols128
        n_pad = _ROWS * cols
        x = data
        if n_pad != n:
            x = jnp.pad(x, (0, n_pad - n), constant_values=-jnp.inf)
        x2d = x.reshape(_ROWS, cols)

        out2d = pl.pallas_call(
            _softmax_fused_kernel,
            out_shape=jax.ShapeDtypeStruct((_ROWS, cols), jnp.float32),
            in_specs=[pl.BlockSpec((_ROWS, cols), lambda: (0, 0))],
            out_specs=pl.BlockSpec((_ROWS, cols), lambda: (0, 0)),
        )(x2d)
        return out2d.reshape(n_pad)[:n]

    # ---- large-N streaming path: two passes over (8, TILE_C) tiles ----
    tile_cols = max(min(max_tile_cols, cols128), _LANES)
    tile_cols = ((tile_cols + _LANES - 1) // _LANES) * _LANES
    num_blocks = -(-cols_needed // tile_cols)
    cols = num_blocks * tile_cols
    n_pad = _ROWS * cols

    x = data
    if n_pad != n:
        # -inf padding is inert: max(-inf, .) is a no-op, exp(-inf - m) == 0.
        x = jnp.pad(x, (0, n_pad - n), constant_values=-jnp.inf)
    x2d = x.reshape(_ROWS, cols)

    # Pass 1: streaming global max and (max-shifted) exp-sum.
    m, l = pl.pallas_call(
        _softmax_stats_kernel,
        out_shape=(
            jax.ShapeDtypeStruct((1, 1), jnp.float32),
            jax.ShapeDtypeStruct((1, 1), jnp.float32),
        ),
        grid=(num_blocks,),
        in_specs=[pl.BlockSpec((_ROWS, tile_cols), lambda j: (0, j))],
        out_specs=(
            pl.BlockSpec((1, 1), lambda j: (0, 0)),
            pl.BlockSpec((1, 1), lambda j: (0, 0)),
        ),
        compiler_params=pltpu.CompilerParams(
            dimension_semantics=("arbitrary",),  # reduction axis: outputs resident
        ),
    )(x2d)

    # Pass 2: streaming normalize; chunks are independent -> "parallel".
    out2d = pl.pallas_call(
        _softmax_norm_kernel,
        out_shape=jax.ShapeDtypeStruct((_ROWS, cols), jnp.float32),
        grid=(num_blocks,),
        in_specs=[
            pl.BlockSpec((1, 1), lambda j: (0, 0)),
            pl.BlockSpec((1, 1), lambda j: (0, 0)),
            pl.BlockSpec((_ROWS, tile_cols), lambda j: (0, j)),
        ],
        out_specs=pl.BlockSpec((_ROWS, tile_cols), lambda j: (0, j)),
        compiler_params=pltpu.CompilerParams(
            dimension_semantics=("parallel",),
        ),
    )(m, l, x2d)

    return out2d.reshape(n_pad)[:n]


if __name__ == "__main__":
    # Deterministic small input (1-D vector, seq=8), matching the module's forward signature.
    key = jax.random.PRNGKey(0)
    data = jax.random.normal(key, (8,), dtype=jnp.float32)

    out = softmax_stable(data)
    jax.block_until_ready(out)

    ref = jax.nn.softmax(data.astype(jnp.float32))
    assert out.shape == (8,) and out.dtype == jnp.float32
    assert jnp.allclose(out, ref, atol=1e-6, rtol=1e-6)
    assert jnp.allclose(jnp.sum(out), 1.0, atol=1e-6)

    # The literal example tensor from the source file: [-1, -2, 3]
    small = jnp.array([-1.0, -2.0, 3.0], dtype=jnp.float32)
    out_small = softmax_stable(small)
    jax.block_until_ready(out_small)
    assert jnp.allclose(out_small, jax.nn.softmax(small), atol=1e-6, rtol=1e-6)

    # Moderate length on the fused single-kernel fast path.
    mid = jax.random.normal(jax.random.PRNGKey(2), (5_000,), dtype=jnp.float32)
    out_mid = softmax_stable(mid)
    jax.block_until_ready(out_mid)
    assert jnp.allclose(out_mid, jax.nn.softmax(mid), rtol=1e-4, atol=1e-9)

    # Force the streaming two-pass path with small tiles to exercise
    # multi-chunk online accumulation + -inf masking.
    big = jax.random.normal(jax.random.PRNGKey(1), (10_000,), dtype=jnp.float32)
    out_big = softmax_stable(big, max_tile_cols=256, fused_max_cols=0)
    jax.block_until_ready(out_big)
    ref_big = jax.nn.softmax(big)
    assert out_big.shape == (10_000,)
    assert jnp.allclose(out_big, ref_big, rtol=1e-4, atol=1e-9)
    assert jnp.allclose(jnp.sum(out_big), 1.0, atol=1e-4)

    print("KERNEL_OK")
</pallas_src>

<mosaic_0001>
module attributes {stable_mosaic.version = 11 : i64} {
  func.func @_softmax_fused_kernel(%arg0: memref<8x128xf32, #tpu.memory_space<vmem>>, %arg1: memref<8x128xf32, #tpu.memory_space<vmem>>) attributes {dimension_semantics = [], scalar_prefetch = 0 : i64, scratch_operands = 0 : i64, tpu.core_type = #tpu.core_type<tc>} {
    %c0 = arith.constant 0 : index
    %c0_0 = arith.constant 0 : index
    %0 = vector.load %arg0[%c0, %c0_0] : memref<8x128xf32, #tpu.memory_space<vmem>>, vector<8x128xf32>
    %cst = arith.constant dense<0xFF800000> : vector<128xf32>
    %1 = vector.multi_reduction <maximumf>, %0, %cst [0] : vector<8x128xf32> to vector<128xf32>
    %2 = vector.shape_cast %1 : vector<128xf32> to vector<1x128xf32>
    %cst_1 = arith.constant dense<0xFF800000> : vector<1xf32>
    %3 = vector.multi_reduction <maximumf>, %2, %cst_1 [1] : vector<1x128xf32> to vector<1xf32>
    %4 = vector.shape_cast %3 : vector<1xf32> to vector<1x1xf32>
    %5 = vector.broadcast %4 : vector<1x1xf32> to vector<8x128xf32>
    %6 = arith.subf %0, %5 : vector<8x128xf32>
    %7 = math.exp %6 : vector<8x128xf32>
    %cst_2 = arith.constant dense<0.000000e+00> : vector<128xf32>
    %8 = vector.multi_reduction <add>, %7, %cst_2 [0] : vector<8x128xf32> to vector<128xf32>
    %9 = vector.shape_cast %8 : vector<128xf32> to vector<1x128xf32>
    %cst_3 = arith.constant dense<0.000000e+00> : vector<1xf32>
    %10 = vector.multi_reduction <add>, %9, %cst_3 [1] : vector<1x128xf32> to vector<1xf32>
    %11 = vector.shape_cast %10 : vector<1xf32> to vector<1x1xf32>
    %12 = tpu.reciprocal %11 : vector<1x1xf32> -> vector<1x1xf32>
    %13 = vector.broadcast %12 : vector<1x1xf32> to vector<8x128xf32>
    %14 = arith.mulf %7, %13 : vector<8x128xf32>
    %c0_4 = arith.constant 0 : index
    %c0_5 = arith.constant 0 : index
    %15 = vector.load %arg1[%c0_4, %c0_5] : memref<8x128xf32, #tpu.memory_space<vmem>>, vector<8x128xf32>
    tpu.vector_store %arg1[%c0_4, %c0_5], %14 {strides = array<i32>} : memref<8x128xf32, #tpu.memory_space<vmem>>, vector<8x128xf32>,
    return
  }
}

</mosaic_0001>

<llo_original>
// kernel: tpu_custom_call.1
$region0: #{tpu_custom_call.1}
  #allocation0 [shape = 'u32[]', space=smem, size = 0x4, offset = 0x4, fixed_abs, tag = 'smem constant byte address 0x4 - core index']
  #allocation1 [shape = 'u32[144,128]{1,0:T(1,128)}', space=vmem, size = 0x12000, scoped, tag = 'internal scratch']
  %s0 = inlined_call_operand.hbm [shape: f32[8,128], index: 0, kind: input, shape index: {}]
  %s1 = inlined_call_operand.hbm [shape: f32[8,128], index: 1, kind: output, shape index: {}]
  %s2 = sld [smem:[#allocation0]]
  $region18: #{tpu_custom_call.1} parent=0
    _
  %s4 = ssub.s32 1, %s2
  %s5 = scalar_select 0, %s4, %s2
  $region1: #{tpu_custom_call.1} parent=0
    #allocation2 [shape = 'u8[4096]{0}', space=vmem, size = 0x1000, scoped, tag = 'input window, operand 0, single buffered']
    #allocation3 [shape = 's32[1]{0}', space=sflag, size = 0x4, scoped, tag = 'scoped memory for tpu_custom_call.1']
    #allocation4 [shape = 's32[1]{0}', space=sflag, size = 0x4, scoped, tag = 'scoped memory for tpu_custom_call.1']
    #allocation5 [shape = 'u8[4096]{0}', space=vmem, size = 0x1000, scoped, tag = 'output window, operand 0, single buffered']
    %6 = vsyncpa [#allocation3], 0
    %7 = vsyncpa [#allocation4], 0
    // Predicated region
    $region2: #{tpu_custom_call.1} parent=1 // pred_check
      _
    $region3: #{tpu_custom_call.1} parent=1 // pred_check_branch
      %9 = sbr.rel (0) target = $region5
    $region4: #{tpu_custom_call.1} parent=1 // pred_region
      %s11 = ssub.s32 128, 128
      %12 = vsyncadd [#allocation3], %s11
      %s14 = sshll.u32 [#allocation2], 4
      %s15 = int_to_ptr.vmem [resolvable:$true] %s14
      %17 = dma.hbm_to_vmem [thread:$0]  %s0, 128, %s15, [#allocation3]
    $region5: #{tpu_custom_call.1} parent=1 // pred_fallthru
      _
    // Predicated region
    $region6: #{tpu_custom_call.1} parent=1 // pred_check
      _
    $region7: #{tpu_custom_call.1} parent=1 // pred_check_branch
      %19 = sbr.rel (0) target = $region9
    $region8: #{tpu_custom_call.1} parent=1 // pred_region
      %20 = dma.done [#allocation3], 128
    $region9: #{tpu_custom_call.1} parent=1 // pred_fallthru
      _
    %v21 = vld [vmem:[#allocation2] sm:$0xff]
    %v22 = vrot.slane %v21, 4
    %v23 = vmax.f32 %v21, %v22
    %v24 = vrot.slane %v23, 2
    %v25 = vmax.f32 %v23, %v24
    %v26 = vrot.slane %v25, 1
    %v27 = vmax.f32 %v25, %v26
    %28 = vmax.xlane.f32.xlu0 %v27
    %v29 = vpop.xlane.xlu0 %28
    %v30 = vsub.f32 %v21, %v29
    %v31 = vmul.f32 %v30, 1.442695
    %v32 = vpow.pop %v31
    %v33 = vrot.slane %v32, 4
    %v34 = vadd.f32 %v32, %v33
    %v35 = vrot.slane %v34, 2
    %v36 = vadd.f32 %v34, %v35
    %v37 = vrot.slane %v36, 1
    %v38 = vadd.f32 %v36, %v37
    %39 = vadd.xlane.f32.xlu0 %v38
    %v40 = vpop.xlane.xlu0 %39
    %v41 = vrcp.pop %v40
    %v42 = vmul.f32 %v32, %v41
    %43 = vst [vmem:[#allocation5] sm:$0xff] %v42
    // Predicated region
    $region10: #{tpu_custom_call.1} parent=1 // pred_check
      _
    $region11: #{tpu_custom_call.1} parent=1 // pred_check_branch
      %45 = sbr.rel (0) target = $region13
    $region12: #{tpu_custom_call.1} parent=1 // pred_region
      %s47 = ssub.s32 128, 128
      %48 = vsyncadd [#allocation4], %s47
      %s50 = sshll.u32 [#allocation5], 4
      %s51 = int_to_ptr.vmem [resolvable:$true] %s50
      %53 = dma.vmem_to_hbm [thread:$0]  %s51, 128, %s1, [#allocation4]
    $region13: #{tpu_custom_call.1} parent=1 // pred_fallthru
      _
    // Predicated region
    $region14: #{tpu_custom_call.1} parent=1 // pred_check
      _
    $region15: #{tpu_custom_call.1} parent=1 // pred_check_branch
      %55 = sbr.rel (0) target = $region17
    $region16: #{tpu_custom_call.1} parent=1 // pred_region
      %56 = dma.done [#allocation4], 128
    $region17: #{tpu_custom_call.1} parent=1 // pred_fallthru
      _
    %57 = vsyncpa [#allocation3], 1
    %58 = vsyncpa [#allocation4], 1

</llo_original>
